<compile_context>
chip_gen: v7x
topology: tpu7x:2x2x1
jax: 0.10.0
libtpu: 0.0.40
codegen_flags: <defaults>
</compile_context>

<pallas_src>
import functools

import jax
import jax.numpy as jnp
from jax.experimental import pallas as pl
from jax.experimental.pallas import tpu as pltpu


def _round_up(v: int, m: int) -> int:
    return ((v + m - 1) // m) * m


def _decoder_kernel(x_ref, rproj_ref, w1x_ref, w2_ref, wh_ref, b2_ref, bh_ref,
                    mu_ref, var_ref, *, x_dim, y_dim):
    """One (batch b, row-tile j) step of the decoder MLP.

    x_ref     : (1, TN, x_dim) f32   x rows of batch b
    rproj_ref : (1, 1, 64)     f32   r @ w1[x_dim:] + b1 (per-batch, precomputed)
    w1x_ref   : (x_dim, 64)    f32   x-columns of the first Linear
    w2_ref    : (64, 64)       bf16  b2_ref : (1, 64) f32
    wh_ref    : (64, 2*y_dim)  bf16  fused [w_mu | w_var]; bh_ref : (1, 2*y_dim) f32
    mu_ref    : (1, TN, y_dim) f32
    var_ref   : (1, TN, y_dim) f32
    """
    x = x_ref[0]                       # (TN, x_dim)
    rp = rproj_ref[0]                  # (1, 64) -> broadcasts over rows

    # --- layer 1 ---
    # The r-part (constant per batch) arrives pre-projected with b1 folded in.
    if x_dim <= 8:
        # K = x_dim is tiny: run it on the VPU as x_dim broadcast multiply-adds
        # (keeps f32 precision, saves MXU passes; VALU slot has large slack).
        w1x = w1x_ref[...]                                 # (x_dim, 64)
        z1 = rp + x[:, 0:1] * w1x[0:1, :]
        for d in range(1, x_dim):
            z1 = z1 + x[:, d:d + 1] * w1x[d:d + 1, :]
    else:
        z1 = jnp.dot(x.astype(jnp.bfloat16),
                     w1x_ref[...].astype(jnp.bfloat16),
                     preferred_element_type=jnp.float32) + rp
    a1 = jnp.maximum(z1, 0.0)

    # --- layer 2: bf16 operands, f32 accumulation (single MXU pass) ---
    z2 = jnp.dot(a1.astype(jnp.bfloat16), w2_ref[...],
                 preferred_element_type=jnp.float32) + b2_ref[...]
    a2 = jnp.maximum(z2, 0.0)

    # --- fused heads: one MXU pass for [mu | pre_var] ---
    head = jnp.dot(a2.astype(jnp.bfloat16), wh_ref[...],
                   preferred_element_type=jnp.float32) + bh_ref[...]

    mu_ref[0] = head[:, :y_dim].astype(mu_ref.dtype)
    # softplus only on the var head (numerically stable log(1 + exp(x)))
    var_ref[0] = jnp.logaddexp(head[:, y_dim:], 0.0).astype(var_ref.dtype)


@functools.partial(jax.jit, static_argnames=("tile_n",))
def decoder_forward(x, r, params, tile_n=2048):
    """x: (B, N, x_dim), r: (B, r_dim) -> (mu, var), each (B, N, y_dim)."""
    B, N, x_dim = x.shape
    y_dim = params["w_mu"].shape[-1]

    w1 = params["w1"].astype(jnp.float32)                  # (x_dim + r_dim, 64)
    # Pre-project r through the r-columns of w1; fold in b1.  Shape (B, 1, 64).
    r_proj = (r.astype(jnp.float32) @ w1[x_dim:] + params["b1"][0])[:, None, :]
    w1x = w1[:x_dim]                                       # (x_dim, 64), f32

    # MXU-facing weights as bf16 (tiny, resident); biases stay f32.
    w2 = params["w2"].astype(jnp.bfloat16)                 # (64, 64)
    b2 = params["b2"].astype(jnp.float32)                  # (1, 64)
    w_heads = jnp.concatenate(
        [params["w_mu"], params["w_var"]], axis=1).astype(jnp.bfloat16)  # (64, 2*y_dim)
    b_heads = jnp.concatenate(
        [params["b_mu"], params["b_var"]], axis=1).astype(jnp.float32)   # (1, 2*y_dim)

    # Row tile: 128-aligned, large (amortize ~0.35 us/step pipeline overhead),
    # no explicit padding -- Pallas masks the partial last block.
    if N <= tile_n:
        tile = N                       # single block covers the full row axis
    else:
        tile = _round_up(min(tile_n, N), 128)
    n_tiles = pl.cdiv(N, tile)
    # v7x megacore: expose >= 2 comparable grid steps when possible so both
    # TensorCores get work (no-op on single-TC v5e/v6e).
    if B * n_tiles < 2 and N >= 256:
        tile = _round_up(pl.cdiv(N, 2), 128)
        n_tiles = pl.cdiv(N, tile)

    x_in = x.astype(jnp.float32)
    grid = (B, n_tiles)

    def const_spec(shape):
        nd = len(shape)
        return pl.BlockSpec(shape, lambda b, j, _nd=nd: (0,) * _nd)

    kernel = functools.partial(_decoder_kernel, x_dim=x_dim, y_dim=y_dim)

    mu, var = pl.pallas_call(
        kernel,
        out_shape=(
            jax.ShapeDtypeStruct((B, N, y_dim), jnp.float32),   # mu
            jax.ShapeDtypeStruct((B, N, y_dim), jnp.float32),   # var
        ),
        grid_spec=pltpu.PrefetchScalarGridSpec(
            num_scalar_prefetch=0,
            grid=grid,
            in_specs=[
                pl.BlockSpec((1, tile, x_dim), lambda b, j: (b, j, 0)),   # x rows
                pl.BlockSpec((1, 1, 64), lambda b, j: (b, 0, 0)),          # r_proj[b]
                const_spec(w1x.shape),
                const_spec(w2.shape),
                const_spec(w_heads.shape),
                const_spec(b2.shape),
                const_spec(b_heads.shape),
            ],
            out_specs=(
                pl.BlockSpec((1, tile, y_dim), lambda b, j: (b, j, 0)),
                pl.BlockSpec((1, tile, y_dim), lambda b, j: (b, j, 0)),
            ),
        ),
        compiler_params=pltpu.CompilerParams(
            dimension_semantics=("parallel", "parallel")),
    )(x_in, r_proj, w1x, w2, w_heads, b2, b_heads)

    return mu, var


def init_decoder_params(key, x_dim, y_dim, r_dim):
    """Deterministic init mimicking torch.nn.Linear default (U[-1/sqrt(fan_in), +])."""
    d_in = x_dim + r_dim

    def linear(k, fan_in, fan_out):
        kw, kb = jax.random.split(k)
        bound = 1.0 / jnp.sqrt(fan_in)
        w = jax.random.uniform(kw, (fan_in, fan_out), jnp.float32, -bound, bound)
        b = jax.random.uniform(kb, (1, fan_out), jnp.float32, -bound, bound)
        return w, b

    k1, k2, k3, k4 = jax.random.split(key, 4)
    w1, b1 = linear(k1, d_in, 64)
    w2, b2 = linear(k2, 64, 64)
    w_mu, b_mu = linear(k3, 64, y_dim)
    w_var, b_var = linear(k4, 64, y_dim)
    return dict(w1=w1, b1=b1, w2=w2, b2=b2,
                w_mu=w_mu, b_mu=b_mu, w_var=w_var, b_var=b_var)


def _reference_forward(x, r, params):
    """Pure-JAX f32 reference (mirrors the PyTorch module)."""
    B, N, _ = x.shape
    r_b = jnp.broadcast_to(r[:, None, :], (B, N, r.shape[-1]))
    h = jnp.concatenate([x, r_b], axis=-1)
    h = jnp.maximum(h @ params["w1"] + params["b1"][0], 0.0)
    h = jnp.maximum(h @ params["w2"] + params["b2"][0], 0.0)
    mu = h @ params["w_mu"] + params["b_mu"][0]
    var = jax.nn.softplus(h @ params["w_var"] + params["b_var"][0])
    return mu, var


if __name__ == "__main__":
    # small shapes consistent with the module
    B, N = 2, 8
    x_dim, y_dim, r_dim = 4, 3, 32

    key = jax.random.PRNGKey(0)
    kx, kr, kp = jax.random.split(key, 3)
    x = jax.random.normal(kx, (B, N, x_dim), jnp.float32)
    r = jax.random.normal(kr, (B, r_dim), jnp.float32)
    params = init_decoder_params(kp, x_dim, y_dim, r_dim)

    mu, var = decoder_forward(x, r, params)
    jax.block_until_ready((mu, var))

    mu_ref, var_ref = _reference_forward(x, r, params)
    assert mu.shape == (B, N, y_dim) and var.shape == (B, N, y_dim)
    # bf16 MXU operands (f32 accumulation) => relaxed parity vs the f32 ref.
    assert jnp.allclose(mu, mu_ref, atol=5e-2, rtol=5e-2)
    assert jnp.allclose(var, var_ref, atol=5e-2, rtol=5e-2)
    assert bool(jnp.all(var > 0.0))

    print("KERNEL_OK")
</pallas_src>

<mosaic_0001>
module attributes {stable_mosaic.version = 11 : i64} {
  func.func @_decoder_kernel(%arg0: i32, %arg1: i32, %arg2: memref<1x8x4xf32, #tpu.memory_space<vmem>>, %arg3: memref<1x1x64xf32, #tpu.memory_space<vmem>>, %arg4: memref<4x64xf32, #tpu.memory_space<vmem>>, %arg5: memref<64x64xbf16, #tpu.memory_space<vmem>>, %arg6: memref<64x6xbf16, #tpu.memory_space<vmem>>, %arg7: memref<1x64xf32, #tpu.memory_space<vmem>>, %arg8: memref<1x6xf32, #tpu.memory_space<vmem>>, %arg9: memref<1x8x3xf32, #tpu.memory_space<vmem>>, %arg10: memref<1x8x3xf32, #tpu.memory_space<vmem>>) attributes {dimension_semantics = [#tpu.dimension_semantics<parallel>, #tpu.dimension_semantics<parallel>], iteration_bounds = array<i64: 2, 1>, scalar_prefetch = 0 : i64, scratch_operands = 0 : i64, tpu.core_type = #tpu.core_type<tc>, window_params = [{transform_indices = @transform_0, window_bounds = array<i64: 1, 8, 4>}, {transform_indices = @transform_1, window_bounds = array<i64: 1, 1, 64>}, {pipeline_mode = #tpu.pipeline_mode<synchronous>, transform_indices = @transform_2, window_bounds = array<i64: 4, 64>}, {pipeline_mode = #tpu.pipeline_mode<synchronous>, transform_indices = @transform_3, window_bounds = array<i64: 64, 64>}, {pipeline_mode = #tpu.pipeline_mode<synchronous>, transform_indices = @transform_4, window_bounds = array<i64: 64, 6>}, {pipeline_mode = #tpu.pipeline_mode<synchronous>, transform_indices = @transform_5, window_bounds = array<i64: 1, 64>}, {pipeline_mode = #tpu.pipeline_mode<synchronous>, transform_indices = @transform_6, window_bounds = array<i64: 1, 6>}, {transform_indices = @transform_7, window_bounds = array<i64: 1, 8, 3>}, {transform_indices = @transform_8, window_bounds = array<i64: 1, 8, 3>}]} {
    %c0 = arith.constant 0 : index
    %c0_0 = arith.constant 0 : index
    %c0_1 = arith.constant 0 : index
    %0 = vector.load %arg2[%c0, %c0_0, %c0_1] : memref<1x8x4xf32, #tpu.memory_space<vmem>>, vector<1x8x4xf32>
    %1 = vector.shape_cast %0 : vector<1x8x4xf32> to vector<8x4xf32>
    %c0_2 = arith.constant 0 : index
    %c0_3 = arith.constant 0 : index
    %c0_4 = arith.constant 0 : index
    %2 = vector.load %arg3[%c0_2, %c0_3, %c0_4] : memref<1x1x64xf32, #tpu.memory_space<vmem>>, vector<1x1x64xf32>
    %3 = vector.shape_cast %2 : vector<1x1x64xf32> to vector<1x64xf32>
    %c0_5 = arith.constant 0 : index
    %c0_6 = arith.constant 0 : index
    %4 = vector.load %arg4[%c0_5, %c0_6] : memref<4x64xf32, #tpu.memory_space<vmem>>, vector<4x64xf32>
    %5 = vector.extract_strided_slice %1 {offsets = [0, 0], sizes = [8, 1], strides = [1, 1]} : vector<8x4xf32> to vector<8x1xf32>
    %6 = vector.extract_strided_slice %4 {offsets = [0, 0], sizes = [1, 64], strides = [1, 1]} : vector<4x64xf32> to vector<1x64xf32>
    %7 = vector.broadcast %5 : vector<8x1xf32> to vector<8x64xf32>
    %8 = vector.broadcast %6 : vector<1x64xf32> to vector<8x64xf32>
    %9 = arith.mulf %7, %8 : vector<8x64xf32>
    %10 = vector.broadcast %3 : vector<1x64xf32> to vector<8x64xf32>
    %11 = arith.addf %10, %9 : vector<8x64xf32>
    %12 = vector.extract_strided_slice %1 {offsets = [0, 1], sizes = [8, 1], strides = [1, 1]} : vector<8x4xf32> to vector<8x1xf32>
    %13 = vector.extract_strided_slice %4 {offsets = [1, 0], sizes = [1, 64], strides = [1, 1]} : vector<4x64xf32> to vector<1x64xf32>
    %14 = vector.broadcast %12 : vector<8x1xf32> to vector<8x64xf32>
    %15 = vector.broadcast %13 : vector<1x64xf32> to vector<8x64xf32>
    %16 = arith.mulf %14, %15 : vector<8x64xf32>
    %17 = arith.addf %11, %16 : vector<8x64xf32>
    %18 = vector.extract_strided_slice %1 {offsets = [0, 2], sizes = [8, 1], strides = [1, 1]} : vector<8x4xf32> to vector<8x1xf32>
    %19 = vector.extract_strided_slice %4 {offsets = [2, 0], sizes = [1, 64], strides = [1, 1]} : vector<4x64xf32> to vector<1x64xf32>
    %20 = vector.broadcast %18 : vector<8x1xf32> to vector<8x64xf32>
    %21 = vector.broadcast %19 : vector<1x64xf32> to vector<8x64xf32>
    %22 = arith.mulf %20, %21 : vector<8x64xf32>
    %23 = arith.addf %17, %22 : vector<8x64xf32>
    %24 = vector.extract_strided_slice %1 {offsets = [0, 3], sizes = [8, 1], strides = [1, 1]} : vector<8x4xf32> to vector<8x1xf32>
    %25 = vector.extract_strided_slice %4 {offsets = [3, 0], sizes = [1, 64], strides = [1, 1]} : vector<4x64xf32> to vector<1x64xf32>
    %26 = vector.broadcast %24 : vector<8x1xf32> to vector<8x64xf32>
    %27 = vector.broadcast %25 : vector<1x64xf32> to vector<8x64xf32>
    %28 = arith.mulf %26, %27 : vector<8x64xf32>
    %29 = arith.addf %23, %28 : vector<8x64xf32>
    %cst = arith.constant 0.000000e+00 : f32
    %30 = vector.broadcast %cst : f32 to vector<8x64xf32>
    %31 = arith.maximumf %29, %30 : vector<8x64xf32>
    %32 = arith.truncf %31 : vector<8x64xf32> to vector<8x64xbf16>
    %c0_7 = arith.constant 0 : index
    %c0_8 = arith.constant 0 : index
    %33 = vector.load %arg5[%c0_7, %c0_8] : memref<64x64xbf16, #tpu.memory_space<vmem>>, vector<64x64xbf16>
    %cst_9 = arith.constant dense<0.000000e+00> : vector<8x64xf32>
    %34 = tpu.matmul %32, %33, %cst_9 {dimension_numbers = #tpu.dot_dimension_numbers<[1], [0], [0], [1], [0, 0, 1, 1], [], []>} : vector<8x64xbf16>, vector<64x64xbf16>, vector<8x64xf32> -> vector<8x64xf32>
    %c0_10 = arith.constant 0 : index
    %c0_11 = arith.constant 0 : index
    %35 = vector.load %arg7[%c0_10, %c0_11] : memref<1x64xf32, #tpu.memory_space<vmem>>, vector<1x64xf32>
    %36 = vector.broadcast %35 : vector<1x64xf32> to vector<8x64xf32>
    %37 = arith.addf %34, %36 : vector<8x64xf32>
    %cst_12 = arith.constant 0.000000e+00 : f32
    %38 = vector.broadcast %cst_12 : f32 to vector<8x64xf32>
    %39 = arith.maximumf %37, %38 : vector<8x64xf32>
    %40 = arith.truncf %39 : vector<8x64xf32> to vector<8x64xbf16>
    %c0_13 = arith.constant 0 : index
    %c0_14 = arith.constant 0 : index
    %41 = vector.load %arg6[%c0_13, %c0_14] : memref<64x6xbf16, #tpu.memory_space<vmem>>, vector<64x6xbf16>
    %cst_15 = arith.constant dense<0.000000e+00> : vector<8x6xf32>
    %42 = tpu.matmul %40, %41, %cst_15 {dimension_numbers = #tpu.dot_dimension_numbers<[1], [0], [0], [1], [0, 0, 1, 1], [], []>} : vector<8x64xbf16>, vector<64x6xbf16>, vector<8x6xf32> -> vector<8x6xf32>
    %c0_16 = arith.constant 0 : index
    %c0_17 = arith.constant 0 : index
    %43 = vector.load %arg8[%c0_16, %c0_17] : memref<1x6xf32, #tpu.memory_space<vmem>>, vector<1x6xf32>
    %44 = vector.broadcast %43 : vector<1x6xf32> to vector<8x6xf32>
    %45 = arith.addf %42, %44 : vector<8x6xf32>
    %46 = vector.extract_strided_slice %45 {offsets = [0, 0], sizes = [8, 3], strides = [1, 1]} : vector<8x6xf32> to vector<8x3xf32>
    %c0_18 = arith.constant 0 : index
    %c0_19 = arith.constant 0 : index
    %c0_20 = arith.constant 0 : index
    %47 = vector.load %arg9[%c0_18, %c0_19, %c0_20] : memref<1x8x3xf32, #tpu.memory_space<vmem>>, vector<1x8x3xf32>
    %48 = vector.shape_cast %47 : vector<1x8x3xf32> to vector<8x3xf32>
    %49 = vector.shape_cast %46 : vector<8x3xf32> to vector<1x8x3xf32>
    tpu.vector_store %arg9[%c0_18, %c0_19, %c0_20], %49 {strides = array<i32>} : memref<1x8x3xf32, #tpu.memory_space<vmem>>, vector<1x8x3xf32>,
    %50 = vector.extract_strided_slice %45 {offsets = [0, 3], sizes = [8, 3], strides = [1, 1]} : vector<8x6xf32> to vector<8x3xf32>
    %cst_21 = arith.constant 0.000000e+00 : f32
    %51 = vector.broadcast %cst_21 : f32 to vector<8x3xf32>
    %52 = arith.maximumf %50, %51 : vector<8x3xf32>
    %53 = vector.broadcast %cst_21 : f32 to vector<8x3xf32>
    %54 = arith.subf %50, %53 : vector<8x3xf32>
    %55 = arith.cmpf one, %54, %54 : vector<8x3xf32>
    %56 = vector.broadcast %cst_21 : f32 to vector<8x3xf32>
    %57 = arith.addf %50, %56 : vector<8x3xf32>
    %58 = math.absf %54 : vector<8x3xf32>
    %cst_22 = arith.constant 0.000000e+00 : f32
    %59 = vector.broadcast %cst_22 : f32 to vector<8x3xf32>
    %60 = arith.subf %59, %58 : vector<8x3xf32>
    %61 = math.exp %60 : vector<8x3xf32>
    %62 = math.log1p %61 : vector<8x3xf32>
    %63 = arith.addf %52, %62 : vector<8x3xf32>
    %64 = arith.select %55, %57, %63 : vector<8x3xi1>, vector<8x3xf32>
    %c0_23 = arith.constant 0 : index
    %c0_24 = arith.constant 0 : index
    %c0_25 = arith.constant 0 : index
    %65 = vector.load %arg10[%c0_23, %c0_24, %c0_25] : memref<1x8x3xf32, #tpu.memory_space<vmem>>, vector<1x8x3xf32>
    %66 = vector.shape_cast %65 : vector<1x8x3xf32> to vector<8x3xf32>
    %67 = vector.shape_cast %64 : vector<8x3xf32> to vector<1x8x3xf32>
    tpu.vector_store %arg10[%c0_23, %c0_24, %c0_25], %67 {strides = array<i32>} : memref<1x8x3xf32, #tpu.memory_space<vmem>>, vector<1x8x3xf32>,
    return
  }
  func.func @transform_0(%arg0: i32, %arg1: i32) -> (i32, i32, i32) {
    %c0_i32 = arith.constant 0 : i32
    %c0_i32_0 = arith.constant 0 : i32
    return %arg0, %arg1, %c0_i32 : i32, i32, i32
  }
  func.func @transform_1(%arg0: i32, %arg1: i32) -> (i32, i32, i32) {
    %c0_i32 = arith.constant 0 : i32
    %c0_i32_0 = arith.constant 0 : i32
    %c0_i32_1 = arith.constant 0 : i32
    return %arg0, %c0_i32, %c0_i32_0 : i32, i32, i32
  }
  func.func @transform_2(%arg0: i32, %arg1: i32) -> (i32, i32) {
    %c0_i32 = arith.constant 0 : i32
    %c0_i32_0 = arith.constant 0 : i32
    %c0_i32_1 = arith.constant 0 : i32
    return %c0_i32, %c0_i32_0 : i32, i32
  }
  func.func @transform_3(%arg0: i32, %arg1: i32) -> (i32, i32) {
    %c0_i32 = arith.constant 0 : i32
    %c0_i32_0 = arith.constant 0 : i32
    %c0_i32_1 = arith.constant 0 : i32
    return %c0_i32, %c0_i32_0 : i32, i32
  }
  func.func @transform_4(%arg0: i32, %arg1: i32) -> (i32, i32) {
    %c0_i32 = arith.constant 0 : i32
    %c0_i32_0 = arith.constant 0 : i32
    %c0_i32_1 = arith.constant 0 : i32
    return %c0_i32, %c0_i32_0 : i32, i32
  }
  func.func @transform_5(%arg0: i32, %arg1: i32) -> (i32, i32) {
    %c0_i32 = arith.constant 0 : i32
    %c0_i32_0 = arith.constant 0 : i32
    %c0_i32_1 = arith.constant 0 : i32
    return %c0_i32, %c0_i32_0 : i32, i32
  }
  func.func @transform_6(%arg0: i32, %arg1: i32) -> (i32, i32) {
    %c0_i32 = arith.constant 0 : i32
    %c0_i32_0 = arith.constant 0 : i32
    %c0_i32_1 = arith.constant 0 : i32
    return %c0_i32, %c0_i32_0 : i32, i32
  }
  func.func @transform_7(%arg0: i32, %arg1: i32) -> (i32, i32, i32) {
    %c0_i32 = arith.constant 0 : i32
    %c0_i32_0 = arith.constant 0 : i32
    return %arg0, %arg1, %c0_i32 : i32, i32, i32
  }
  func.func @transform_8(%arg0: i32, %arg1: i32) -> (i32, i32, i32) {
    %c0_i32 = arith.constant 0 : i32
    %c0_i32_0 = arith.constant 0 : i32
    return %arg0, %arg1, %c0_i32 : i32, i32, i32
  }
}

</mosaic_0001>

<llo_original>
// kernel: decoder_forward.1
$region0: #{decoder_forward.1}
  #allocation0 [shape = 'u32[]', space=smem, size = 0x4, offset = 0x4, fixed_abs, tag = 'smem constant byte address 0x4 - core index']
  #allocation1 [shape = 'u32[144,128]{1,0:T(1,128)}', space=vmem, size = 0x12000, scoped, tag = 'internal scratch']
  %s0 = inlined_call_operand.vmem [shape: f32[2,8,4], index: 0, kind: input, shape index: {}]
  %s1 = inlined_call_operand.vmem [shape: f32[2,1,64], index: 1, kind: input, shape index: {}]
  %s2 = inlined_call_operand.vmem [shape: f32[4,64], index: 2, kind: input, shape index: {}]
  %s3 = inlined_call_operand.vmem [shape: bf16[64,64], index: 3, kind: input, shape index: {}]
  %s4 = inlined_call_operand.vmem [shape: bf16[64,6], index: 4, kind: input, shape index: {}]
  %s5 = inlined_call_operand.vmem [shape: f32[1,64], index: 5, kind: input, shape index: {}]
  %s6 = inlined_call_operand.vmem [shape: f32[1,6], index: 6, kind: input, shape index: {}]
  %s7 = inlined_call_operand.vmem [shape: f32[2,8,3], index: 7, kind: output, shape index: {0}]
  %s8 = inlined_call_operand.vmem [shape: f32[2,8,3], index: 8, kind: output, shape index: {1}]
  %9 = xla_tuple %s7, %s8
  %s10 = sld [smem:[#allocation0]]
  $region69: #{decoder_forward.1} parent=0
    _
  %s12 = ssub.s32 1, %s10
  %s13 = scalar_select 0, %s12, %s10
  loop: start=0, step=1, limit=4
  $region2: #{decoder_forward.1} parent=0 // loop_pre_header
    _
  $region3: #{decoder_forward.1} parent=0 // loop_header
    %s15 = sphi 0, %s19
    %p16 = scmp.ge.s32.totalorder %s15, 4
    %s22 = sphi 0, %s34
    %s23 = sphi 0, %s30
    %s24 = sphi 0, %s22
    %s25 = sphi 0, %s23
    %s26 = sphi 0, %s24
    %s27 = sphi 0, %s25
    %s39 = sphi 0, %s41
    %s42 = sphi 0, %s39
    %s43 = sphi 0, %s42
    %s59 = sphi 0, %s43
    %s65 = sphi 0, %s67
    %s68 = sphi 0, %s65
    %s69 = sphi 0, %s68
    %s85 = sphi 0, %s69
    %s89 = sphi 0, %s89
    %s91 = sphi 0, %s89
    %s92 = sphi 0, %s91
    %s106 = sphi 0, %s92
    %s110 = sphi 0, %s110
    %s112 = sphi 0, %s110
    %s113 = sphi 0, %s112
    %s127 = sphi 0, %s113
    %s131 = sphi 0, %s131
    %s133 = sphi 0, %s131
    %s134 = sphi 0, %s133
    %s148 = sphi 0, %s134
    %s152 = sphi 0, %s152
    %s154 = sphi 0, %s152
    %s155 = sphi 0, %s154
    %s169 = sphi 0, %s155
    %s173 = sphi 0, %s173
    %s175 = sphi 0, %s173
    %s176 = sphi 0, %s175
    %s190 = sphi 0, %s176
    %s198 = sphi 0, %s200
    %s201 = sphi 0, %s198
    %s202 = sphi 0, %s201
    %s218 = sphi 0, %s202
    %s226 = sphi 0, %s228
    %s229 = sphi 0, %s226
    %s230 = sphi 0, %s229
    %s246 = sphi 0, %s230
  $region4: #{decoder_forward.1} parent=0 // loop_header_branch
    %18 = sbr.rel (%p16) target = $region8
  $region5: #{decoder_forward.1} parent=0 // loop_body
    %s20 = ssub.s32 %s15, 1
    %s21 = ssub.s32 %s15, 2
    %s28 = sadd.s32 1, %s23
    %p29 = scmp.ge.s32.totalorder %s28, 1
    %s30 = scalar_select %p29, 0, %s28
    %s31 = sadd.s32 1, %s22
    %s32 = scalar_select %p29, %s31, %s22
    %p33 = scmp.ge.s32.totalorder %s32, 2
    %s34 = scalar_select %p33, 0, %s32
    %s35 = ssub.s32 %s22, %s34
    %s36 = ssub.s32 %s23, %s30
    %s37 = sor.u32 %s35, %s36
    %p38 = scmp.eq.s32.totalorder %s37, 0
    %s40 = sadd.s32 %s39, 1
    %s41 = scalar_select %p38, %s39, %s40
    %p44 = pneg %p38
    %p45 = scmp.eq.s32.totalorder %s15, 1
    %p46 = por %p44, %p45
    %p47 = scmp.ne.s32.totalorder %s39, %s42
    %p48 = scmp.eq.s32.totalorder %s15, 0
    %p49 = por %p47, %p48
    %p50 = scmp.ne.s32.totalorder %s39, %s42
    %p51 = scmp.eq.s32.totalorder %s20, 1
    %p52 = por %p50, %p51
    %p53 = scmp.ne.s32.totalorder %s42, %s43
    %p54 = scmp.eq.s32.totalorder %s20, 0
    %p55 = por %p53, %p54
    %p56 = scmp.ne.s32.totalorder %s42, %s43
    %p57 = scmp.eq.s32.totalorder %s21, 1
    %p58 = por %p56, %p57
    %p60 = scmp.ne.s32.totalorder %s43, %s59
    %p61 = scmp.eq.s32.totalorder %s21, 0
    %p62 = por %p60, %p61
    %s63 = ssub.s32 %s22, %s34
    %p64 = scmp.eq.s32.totalorder %s63, 0
    %s66 = sadd.s32 %s65, 1
    %s67 = scalar_select %p64, %s65, %s66
    %p70 = pneg %p64
    %p71 = scmp.eq.s32.totalorder %s15, 1
    %p72 = por %p70, %p71
    %p73 = scmp.ne.s32.totalorder %s65, %s68
    %p74 = scmp.eq.s32.totalorder %s15, 0
    %p75 = por %p73, %p74
    %p76 = scmp.ne.s32.totalorder %s65, %s68
    %p77 = scmp.eq.s32.totalorder %s20, 1
    %p78 = por %p76, %p77
    %p79 = scmp.ne.s32.totalorder %s68, %s69
    %p80 = scmp.eq.s32.totalorder %s20, 0
    %p81 = por %p79, %p80
    %p82 = scmp.ne.s32.totalorder %s68, %s69
    %p83 = scmp.eq.s32.totalorder %s21, 1
    %p84 = por %p82, %p83
    %p86 = scmp.ne.s32.totalorder %s69, %s85
    %p87 = scmp.eq.s32.totalorder %s21, 0
    %p88 = por %p86, %p87
    %s90 = sadd.s32 %s89, 1
    %p93 = scmp.eq.s32.totalorder %s15, 1
    %p94 = scmp.ne.s32.totalorder %s89, %s91
    %p95 = scmp.eq.s32.totalorder %s15, 0
    %p96 = por %p94, %p95
    %p97 = scmp.ne.s32.totalorder %s89, %s91
    %p98 = scmp.eq.s32.totalorder %s20, 1
    %p99 = por %p97, %p98
    %p100 = scmp.ne.s32.totalorder %s91, %s92
    %p101 = scmp.eq.s32.totalorder %s20, 0
    %p102 = por %p100, %p101
    %p103 = scmp.ne.s32.totalorder %s91, %s92
    %p104 = scmp.eq.s32.totalorder %s21, 1
    %p105 = por %p103, %p104
    %p107 = scmp.ne.s32.totalorder %s92, %s106
    %p108 = scmp.eq.s32.totalorder %s21, 0
    %p109 = por %p107, %p108
    %s111 = sadd.s32 %s110, 1
    %p114 = scmp.eq.s32.totalorder %s15, 1
    %p115 = scmp.ne.s32.totalorder %s110, %s112
    %p116 = scmp.eq.s32.totalorder %s15, 0
    %p117 = por %p115, %p116
    %p118 = scmp.ne.s32.totalorder %s110, %s112
    %p119 = scmp.eq.s32.totalorder %s20, 1
    %p120 = por %p118, %p119
    %p121 = scmp.ne.s32.totalorder %s112, %s113
    %p122 = scmp.eq.s32.totalorder %s20, 0
    %p123 = por %p121, %p122
    %p124 = scmp.ne.s32.totalorder %s112, %s113
    %p125 = scmp.eq.s32.totalorder %s21, 1
    %p126 = por %p124, %p125
    %p128 = scmp.ne.s32.totalorder %s113, %s127
    %p129 = scmp.eq.s32.totalorder %s21, 0
    %p130 = por %p128, %p129
    %s132 = sadd.s32 %s131, 1
    %p135 = scmp.eq.s32.totalorder %s15, 1
    %p136 = scmp.ne.s32.totalorder %s131, %s133
    %p137 = scmp.eq.s32.totalorder %s15, 0
    %p138 = por %p136, %p137
    %p139 = scmp.ne.s32.totalorder %s131, %s133
    %p140 = scmp.eq.s32.totalorder %s20, 1
    %p141 = por %p139, %p140
    %p142 = scmp.ne.s32.totalorder %s133, %s134
    %p143 = scmp.eq.s32.totalorder %s20, 0
    %p144 = por %p142, %p143
    %p145 = scmp.ne.s32.totalorder %s133, %s134
    %p146 = scmp.eq.s32.totalorder %s21, 1
    %p147 = por %p145, %p146
    %p149 = scmp.ne.s32.totalorder %s134, %s148
    %p150 = scmp.eq.s32.totalorder %s21, 0
    %p151 = por %p149, %p150
    %s153 = sadd.s32 %s152, 1
    %p156 = scmp.eq.s32.totalorder %s15, 1
    %p157 = scmp.ne.s32.totalorder %s152, %s154
    %p158 = scmp.eq.s32.totalorder %s15, 0
    %p159 = por %p157, %p158
    %p160 = scmp.ne.s32.totalorder %s152, %s154
    %p161 = scmp.eq.s32.totalorder %s20, 1
    %p162 = por %p160, %p161
    %p163 = scmp.ne.s32.totalorder %s154, %s155
    %p164 = scmp.eq.s32.totalorder %s20, 0
    %p165 = por %p163, %p164
    %p166 = scmp.ne.s32.totalorder %s154, %s155
    %p167 = scmp.eq.s32.totalorder %s21, 1
    %p168 = por %p166, %p167
    %p170 = scmp.ne.s32.totalorder %s155, %s169
    %p171 = scmp.eq.s32.totalorder %s21, 0
    %p172 = por %p170, %p171
    %s174 = sadd.s32 %s173, 1
    %p177 = scmp.eq.s32.totalorder %s15, 1
    %p178 = scmp.ne.s32.totalorder %s173, %s175
    %p179 = scmp.eq.s32.totalorder %s15, 0
    %p180 = por %p178, %p179
    %p181 = scmp.ne.s32.totalorder %s173, %s175
    %p182 = scmp.eq.s32.totalorder %s20, 1
    %p183 = por %p181, %p182
    %p184 = scmp.ne.s32.totalorder %s175, %s176
    %p185 = scmp.eq.s32.totalorder %s20, 0
    %p186 = por %p184, %p185
    %p187 = scmp.ne.s32.totalorder %s175, %s176
    %p188 = scmp.eq.s32.totalorder %s21, 1
    %p189 = por %p187, %p188
    %p191 = scmp.ne.s32.totalorder %s176, %s190
    %p192 = scmp.eq.s32.totalorder %s21, 0
    %p193 = por %p191, %p192
    %s194 = ssub.s32 %s22, %s34
    %s195 = ssub.s32 %s23, %s30
    %s196 = sor.u32 %s194, %s195
    %p197 = scmp.eq.s32.totalorder %s196, 0
    %s199 = sadd.s32 %s198, 1
    %s200 = scalar_select %p197, %s198, %s199
    %p203 = pneg %p197
    %p204 = scmp.eq.s32.totalorder %s15, 1
    %p205 = por %p203, %p204
    %p206 = scmp.ne.s32.totalorder %s198, %s201
    %p207 = scmp.eq.s32.totalorder %s15, 0
    %p208 = por %p206, %p207
    %p209 = scmp.ne.s32.totalorder %s198, %s201
    %p210 = scmp.eq.s32.totalorder %s20, 1
    %p211 = por %p209, %p210
    %p212 = scmp.ne.s32.totalorder %s201, %s202
    %p213 = scmp.eq.s32.totalorder %s20, 0
    %p214 = por %p212, %p213
    %p215 = scmp.ne.s32.totalorder %s201, %s202
    %p216 = scmp.eq.s32.totalorder %s21, 1
    %p217 = por %p215, %p216
    %p219 = scmp.ne.s32.totalorder %s202, %s218
    %p220 = scmp.eq.s32.totalorder %s21, 0
    %p221 = por %p219, %p220
    %s222 = ssub.s32 %s22, %s34
    %s223 = ssub.s32 %s23, %s30
    %s224 = sor.u32 %s222, %s223
    %p225 = scmp.eq.s32.totalorder %s224, 0
    %s227 = sadd.s32 %s226, 1
    %s228 = scalar_select %p225, %s226, %s227
    %p231 = pneg %p225
    %p232 = scmp.eq.s32.totalorder %s15, 1
    %p233 = por %p231, %p232
    %p234 = scmp.ne.s32.totalorder %s226, %s229
    %p235 = scmp.eq.s32.totalorder %s15, 0
    %p236 = por %p234, %p235
    %p237 = scmp.ne.s32.totalorder %s226, %s229
    %p238 = scmp.eq.s32.totalorder %s20, 1
    %p239 = por %p237, %p238
    %p240 = scmp.ne.s32.totalorder %s229, %s230
    %p241 = scmp.eq.s32.totalorder %s20, 0
    %p242 = por %p240, %p241
    %p243 = scmp.ne.s32.totalorder %s229, %s230
    %p244 = scmp.eq.s32.totalorder %s21, 1
    %p245 = por %p243, %p244
    %p247 = scmp.ne.s32.totalorder %s230, %s246
    %p248 = scmp.eq.s32.totalorder %s21, 0
    %p249 = por %p247, %p248
    %p250 = scmp.le.s32.totalorder 1, %s15
    %p251 = scmp.lt.s32.totalorder %s15, 3
    %p252 = pnand %p250, %p251
    %p253 = pneg %p252
    // Predicated region
    $region9: #{decoder_forward.1} parent=5 // pred_check
      _
    $region10: #{decoder_forward.1} parent=5 // pred_check_branch
      %255 = sbr.rel (%p252) target = $region12
    $region11: #{decoder_forward.1} parent=5 // pred_region
      %s256 = ssub.s32 %s15, 1
      // Predicated region
      $region13: #{decoder_forward.1} parent=11 // pred_check
        %p257 = pneg %p102
      $region14: #{decoder_forward.1} parent=11 // pred_check_branch
        %259 = sbr.rel (%p257) target = $region16
      $region15: #{decoder_forward.1} parent=11 // pred_region
        _
      $region16: #{decoder_forward.1} parent=11 // pred_fallthru
        _
      // Predicated region
      $region17: #{decoder_forward.1} parent=11 // pred_check
        %p260 = pneg %p123
      $region18: #{decoder_forward.1} parent=11 // pred_check_branch
        %262 = sbr.rel (%p260) target = $region20
      $region19: #{decoder_forward.1} parent=11 // pred_region
        _
      $region20: #{decoder_forward.1} parent=11 // pred_fallthru
        _
      // Predicated region
      $region21: #{decoder_forward.1} parent=11 // pred_check
        %p263 = pneg %p144
      $region22: #{decoder_forward.1} parent=11 // pred_check_branch
        %265 = sbr.rel (%p263) target = $region24
      $region23: #{decoder_forward.1} parent=11 // pred_region
        _
      $region24: #{decoder_forward.1} parent=11 // pred_fallthru
        _
      // Predicated region
      $region25: #{decoder_forward.1} parent=11 // pred_check
        %p266 = pneg %p165
      $region26: #{decoder_forward.1} parent=11 // pred_check_branch
        %268 = sbr.rel (%p266) target = $region28
      $region27: #{decoder_forward.1} parent=11 // pred_region
        _
      $region28: #{decoder_forward.1} parent=11 // pred_fallthru
        _
      // Predicated region
      $region29: #{decoder_forward.1} parent=11 // pred_check
        %p269 = pneg %p186
      $region30: #{decoder_forward.1} parent=11 // pred_check_branch
        %271 = sbr.rel (%p269) target = $region32
      $region31: #{decoder_forward.1} parent=11 // pred_region
        _
      $region32: #{decoder_forward.1} parent=11 // pred_fallthru
        _
    $region12: #{decoder_forward.1} parent=5 // pred_fallthru
      _
    %p272 = scmp.lt.s32.totalorder %s15, 2
    // Predicated region
    $region33: #{decoder_forward.1} parent=5 // pred_check
      %p273 = pneg %p272
    $region34: #{decoder_forward.1} parent=5 // pred_check_branch
      %275 = sbr.rel (%p273) target = $region36
    $region35: #{decoder_forward.1} parent=5 // pred_region
      // Predicated region
      $region37: #{decoder_forward.1} parent=35 // pred_check
        %p276 = pneg %p49
      $region38: #{decoder_forward.1} parent=35 // pred_check_branch
        %278 = sbr.rel (%p276) target = $region40
      $region39: #{decoder_forward.1} parent=35 // pred_region
        %p279 = scmp.lt.s32.totalorder %s22, 1
        %s280 = scalar_select %p279, %s22, 1
        %p281 = scmp.lt.s32.totalorder %s23, 0
        %s282 = scalar_select %p281, %s23, 0
        %s283 = sadd.s32 %s282, %s280
        %s284 = smul.addr %s283, 8
        %s285 = scalar_lea.vmem %s0, %s284
      $region40: #{decoder_forward.1} parent=35 // pred_fallthru
        _
      // Predicated region
      $region41: #{decoder_forward.1} parent=35 // pred_check
        %p286 = pneg %p75
      $region42: #{decoder_forward.1} parent=35 // pred_check_branch
        %288 = sbr.rel (%p286) target = $region44
      $region43: #{decoder_forward.1} parent=35 // pred_region
        %p289 = scmp.lt.s32.totalorder %s22, 1
        %s290 = scalar_select %p289, %s22, 1
        %s291 = scalar_lea.vmem %s1, %s290
      $region44: #{decoder_forward.1} parent=35 // pred_fallthru
        _
    $region36: #{decoder_forward.1} parent=5 // pred_fallthru
      _
    %p292 = scmp.le.s32.totalorder 1, %s15
    %p293 = scmp.lt.s32.totalorder %s15, 3
    %p294 = pnand %p292, %p293
    %p295 = pneg %p294
    // Predicated region
    $region45: #{decoder_forward.1} parent=5 // pred_check
      _
    $region46: #{decoder_forward.1} parent=5 // pred_check_branch
      %297 = sbr.rel (%p294) target = $region48
    $region47: #{decoder_forward.1} parent=5 // pred_region
      %s298 = ssub.s32 %s15, 1
      %p299 = scmp.lt.s32.totalorder %s24, 1
      %s300 = scalar_select %p299, %s24, 1
      %p301 = scmp.lt.s32.totalorder %s25, 0
      %s302 = scalar_select %p301, %s25, 0
      %s303 = sadd.s32 %s302, %s300
      %s304 = smul.addr %s303, 8
      %s305 = scalar_lea.vmem %s0, %s304
      %p306 = pneg %p55
      %p307 = pneg %p52
      %p308 = scmp.lt.s32.totalorder %s24, 1
      %s309 = scalar_select %p308, %s24, 1
      %s310 = scalar_lea.vmem %s1, %s309
      %p311 = pneg %p81
      %p312 = pneg %p78
      %p313 = pneg %p102
      %p314 = pneg %p99
      %p315 = pneg %p123
      %p316 = pneg %p120
      %p317 = pneg %p144
      %p318 = pneg %p141
      %p319 = pneg %p165
      %p320 = pneg %p162
      %p321 = pneg %p186
      %p322 = pneg %p183
      %p323 = pneg %p214
      %p324 = pneg %p211
      %p325 = scmp.lt.s32.totalorder %s24, 1
      %s326 = scalar_select %p325, %s24, 1
      %p327 = scmp.lt.s32.totalorder %s25, 0
      %s328 = scalar_select %p327, %s25, 0
      %s329 = sadd.s32 %s328, %s326
      %s330 = smul.addr %s329, 8
      %s331 = scalar_lea.vmem %s7, %s330
      %p332 = pneg %p242
      %p333 = pneg %p239
      %p334 = scmp.lt.s32.totalorder %s24, 1
      %s335 = scalar_select %p334, %s24, 1
      %p336 = scmp.lt.s32.totalorder %s25, 0
      %s337 = scalar_select %p336, %s25, 0
      %s338 = sadd.s32 %s337, %s335
      %s339 = smul.addr %s338, 8
      %s340 = scalar_lea.vmem %s8, %s339
      %p341 = scmp.lt.s32.totalorder %s24, 1
      %s342 = scalar_select %p341, %s24, 1
      %p343 = scmp.lt.s32.totalorder %s25, 0
      %s344 = scalar_select %p343, %s25, 0
      %s345 = sadd.s32 %s344, %s342
      %s346 = smul.addr %s345, 8
      %s347 = scalar_lea.vmem %s0, %s346
      %p348 = scmp.lt.s32.totalorder %s24, 1
      %s349 = scalar_select %p348, %s24, 1
      %s350 = scalar_lea.vmem %s1, %s349
      %p351 = scmp.lt.s32.totalorder %s24, 1
      %s352 = scalar_select %p351, %s24, 1
      %p353 = scmp.lt.s32.totalorder %s25, 0
      %s354 = scalar_select %p353, %s25, 0
      %s355 = sadd.s32 %s354, %s352
      %s356 = smul.addr %s355, 8
      %s357 = scalar_lea.vmem %s7, %s356
      %p358 = scmp.lt.s32.totalorder %s24, 1
      %s359 = scalar_select %p358, %s24, 1
      %p360 = scmp.lt.s32.totalorder %s25, 0
      %s361 = scalar_select %p360, %s25, 0
      %s362 = sadd.s32 %s361, %s359
      %s363 = smul.addr %s362, 8
      %s364 = scalar_lea.vmem %s8, %s363
      %v366 = vld [vmem:[%s347] sm:$0xff]
      %v367 = vld [vmem:[%s350] sm:$0x1]
      %v368 = vld [vmem:[%s2] sm:$0xf]
      %370 = vset.pattern.permute.xlu0 0
      %371 = vperm.xlu0 %370, %v366
      %v372 = vpop.permute.xlu0 %371
      %v374 = vlaneseq
      %v375 = vshrl.u32 %v374, 7
      %v376 = vsub.s32 0, %v375
      %v377 = vrot.slane %v368, %v376
      %v378 = vmul.f32 %v372, %v377
      %v380 = vlaneseq
      %v381 = vshrl.u32 %v380, 7
      %v382 = vsub.s32 0, %v381
      %v383 = vrot.slane %v367, %v382
      %v385 = vadd.f32 %v383, %v378
      %386 = vset.pattern.permute.xlu0 1
      %387 = vperm.xlu0 %386, %v366
      %v388 = vpop.permute.xlu0 %387
      %v390 = vlaneseq
      %v391 = vshrl.u32 %v390, 7
      %v392 = vsub.s32 1, %v391
      %v393 = vrot.slane %v368, %v392
      %v394 = vmul.f32 %v388, %v393
      %v395 = vadd.f32 %v385, %v394
      %396 = vset.pattern.permute.xlu0 2
      %397 = vperm.xlu0 %396, %v366
      %v398 = vpop.permute.xlu0 %397
      %v400 = vlaneseq
      %v401 = vshrl.u32 %v400, 7
      %v402 = vsub.s32 2, %v401
      %v403 = vrot.slane %v368, %v402
      %v404 = vmul.f32 %v398, %v403
      %v405 = vadd.f32 %v395, %v404
      %406 = vset.pattern.permute.xlu0 3
      %407 = vperm.xlu0 %406, %v366
      %v408 = vpop.permute.xlu0 %407
      %v410 = vlaneseq
      %v411 = vshrl.u32 %v410, 7
      %v412 = vsub.s32 3, %v411
      %v413 = vrot.slane %v368, %v412
      %v414 = vmul.f32 %v408, %v413
      %v415 = vadd.f32 %v405, %v414
      %v416 = vmax.f32 %v415, 0.0
      %v417 = vpack.c.bf16 %v416, %v416
      %v418 = vld [vmem:[%s3] sm:$0xf]
      %v419 = vld [vmem:[%s3 + $0x4] sm:$0xf]
      %v420 = vld [vmem:[%s3 + $0x8] sm:$0xf]
      %v421 = vld [vmem:[%s3 + $0xc] sm:$0xf]
      %v422 = vld [vmem:[%s3 + $0x10] sm:$0xf]
      %v423 = vld [vmem:[%s3 + $0x14] sm:$0xf]
      %v424 = vld [vmem:[%s3 + $0x18] sm:$0xf]
      %v425 = vld [vmem:[%s3 + $0x1c] sm:$0xf]
      %v426 = vld [vmem:[%s5] sm:$0x1]
      %v428 = vlaneseq
      %v429 = vshrl.u32 %v428, 7
      %v430 = vsub.s32 0, %v429
      %v431 = vrot.slane %v426, %v430
      %v441 = vunpack.c.l.b16 %v418
      %v442 = vunpack.c.l.b16 %v419
      %v443 = vunpack.c.l.b16 %v420
      %v444 = vunpack.c.l.b16 %v421
      %v445 = vunpack.c.l.b16 %v422
      %v446 = vunpack.c.l.b16 %v423
      %v447 = vunpack.c.l.b16 %v424
      %v448 = vunpack.c.l.b16 %v425
      %v449 = vpack.c.b16 %v442, %v441
      %v450 = vpack.c.b16 %v444, %v443
      %v451 = vpack.c.b16 %v446, %v445
      %v452 = vpack.c.b16 %v448, %v447
      %vm457 = vcmask 523264
      %v459 = vsel %vm457, %v417, 0
      %461 = vmatprep.subr.bf16.mxu0 0
      %462 = vmatpush1.bf16.msra.mxu0 %v449
      %463 = vmatprep.subr.bf16.mxu0 0
      %464 = vmatpush1.bf16.msra.mxu0 %v450
      %465 = vmatprep.subr.bf16.mxu0 0
      %466 = vmatpush1.bf16.msra.mxu0 %v451
      %467 = vmatprep.subr.bf16.mxu0 0
      %468 = vmatpush1.bf16.msra.mxu0 %v452
      %469 = vmatprep.subr.bf16.mxu0 0
      %470 = vmatpush1.bf16.msra.mxu0 0
      %471 = vmatprep.subr.bf16.mxu0 0
      %472 = vmatpush1.bf16.msra.mxu0 0
      %473 = vmatprep.subr.bf16.mxu0 0
      %474 = vmatpush1.bf16.msra.mxu0 0
      %475 = vmatprep.subr.bf16.mxu0 0
      %476 = vmatpush1.bf16.msra.mxu0 0
      %477 = vmatprep.subr.bf16.mxu0 0
      %478 = vmatpush1.bf16.msra.mxu0 0
      %479 = vmatprep.subr.bf16.mxu0 0
      %480 = vmatpush1.bf16.msra.mxu0 0
      %481 = vmatprep.subr.bf16.mxu0 0
      %482 = vmatpush1.bf16.msra.mxu0 0
      %483 = vmatprep.subr.bf16.mxu0 0
      %484 = vmatpush1.bf16.msra.mxu0 0
      %485 = vmatprep.subr.bf16.mxu0 0
      %486 = vmatpush1.bf16.msra.mxu0 0
      %487 = vmatprep.subr.bf16.mxu0 0
      %488 = vmatpush1.bf16.msra.mxu0 0
      %489 = vmatprep.subr.bf16.mxu0 0
      %490 = vmatpush1.bf16.msra.mxu0 0
      %491 = vmatprep.subr.bf16.mxu0 0
      %492 = vmatpush1.bf16.msra.mxu0 0
      %493 = vmatprep.mubr.bf16.mxu0 0
      %494 = vmatmul.mubr.bf16.gmra.mrb[0].mxu0 %v459
      %v495 = vpop.f32.mrb[0].mxu0
      %v496 = vadd.f32 %v431, %v495
      %v497 = vpop.f32.mrb[0].mxu0
      %v498 = vpop.f32.mrb[0].mxu0
      %v499 = vpop.f32.mrb[0].mxu0
      %500 = vdwg.mxu0
      %v501 = vmax.f32 %v496, 0.0
      %v502 = vpack.c.bf16 %v501, %v501
      %v503 = vld [vmem:[%s4] sm:$0xf]
      %v504 = vld [vmem:[%s4 + $0x4] sm:$0xf]
      %v505 = vld [vmem:[%s4 + $0x8] sm:$0xf]
      %v506 = vld [vmem:[%s4 + $0xc] sm:$0xf]
      %v507 = vld [vmem:[%s4 + $0x10] sm:$0xf]
      %v508 = vld [vmem:[%s4 + $0x14] sm:$0xf]
      %v509 = vld [vmem:[%s4 + $0x18] sm:$0xf]
      %v510 = vld [vmem:[%s4 + $0x1c] sm:$0xf]
      %v511 = vld [vmem:[%s6] sm:$0x1]
      %v513 = vlaneseq
      %v514 = vshrl.u32 %v513, 7
      %v515 = vsub.s32 0, %v514
      %v516 = vrot.slane %v511, %v515
      %v526 = vunpack.c.l.b16 %v503
      %v527 = vunpack.c.l.b16 %v504
      %v528 = vunpack.c.l.b16 %v505
      %v529 = vunpack.c.l.b16 %v506
      %v530 = vunpack.c.l.b16 %v507
      %v531 = vunpack.c.l.b16 %v508
      %v532 = vunpack.c.l.b16 %v509
      %v533 = vunpack.c.l.b16 %v510
      %v534 = vpack.c.b16 %v527, %v526
      %v535 = vpack.c.b16 %v529, %v528
      %v536 = vpack.c.b16 %v531, %v530
      %v537 = vpack.c.b16 %v533, %v532
      %v543 = vsel %vm457, %v502, 0
      %545 = vmatprep.subr.bf16.mxu0 0
      %546 = vmatpush1.bf16.msra.mxu0 %v534
      %547 = vmatprep.subr.bf16.mxu0 0
      %548 = vmatpush1.bf16.msra.mxu0 %v535
      %549 = vmatprep.subr.bf16.mxu0 0
      %550 = vmatpush1.bf16.msra.mxu0 %v536
      %551 = vmatprep.subr.bf16.mxu0 0
      %552 = vmatpush1.bf16.msra.mxu0 %v537
      %553 = vmatprep.subr.bf16.mxu0 0
      %554 = vmatpush1.bf16.msra.mxu0 0
      %555 = vmatprep.subr.bf16.mxu0 0
      %556 = vmatpush1.bf16.msra.mxu0 0
      %557 = vmatprep.subr.bf16.mxu0 0
      %558 = vmatpush1.bf16.msra.mxu0 0
      %559 = vmatprep.subr.bf16.mxu0 0
      %560 = vmatpush1.bf16.msra.mxu0 0
      %561 = vmatprep.subr.bf16.mxu0 0
      %562 = vmatpush1.bf16.msra.mxu0 0
      %563 = vmatprep.subr.bf16.mxu0 0
      %564 = vmatpush1.bf16.msra.mxu0 0
      %565 = vmatprep.subr.bf16.mxu0 0
      %566 = vmatpush1.bf16.msra.mxu0 0
      %567 = vmatprep.subr.bf16.mxu0 0
      %568 = vmatpush1.bf16.msra.mxu0 0
      %569 = vmatprep.subr.bf16.mxu0 0
      %570 = vmatpush1.bf16.msra.mxu0 0
      %571 = vmatprep.subr.bf16.mxu0 0
      %572 = vmatpush1.bf16.msra.mxu0 0
      %573 = vmatprep.subr.bf16.mxu0 0
      %574 = vmatpush1.bf16.msra.mxu0 0
      %575 = vmatprep.subr.bf16.mxu0 0
      %576 = vmatpush1.bf16.msra.mxu0 0
      %577 = vmatprep.mubr.bf16.mxu0 0
      %578 = vmatmul.mubr.bf16.gmra.mrb[0].mxu0 %v543
      %v579 = vpop.f32.mrb[0].mxu0
      %v580 = vadd.f32 %v516, %v579
      %v581 = vpop.f32.mrb[0].mxu0
      %v582 = vpop.f32.mrb[0].mxu0
      %v583 = vpop.f32.mrb[0].mxu0
      %584 = vdwg.mxu0
      %vm585 = vcmask 23552
      %586 = vst.msk [vmem:[%s357] sm:$0xff] %vm585, %v580
      %v587 = vmax.f32 %v580, 0.0
      %vm588 = vcmp.ne.f32.partialorder %v580, %v580
      %v589 = vadd.f32 %v580, 0.0
      %v590 = vand.u32 2147483647, %v580
      %v591 = vsub.f32 0.0, %v590
      %v592 = vmul.f32 %v591, 1.442695
      %v593 = vpow.pop %v592
      %v594 = vadd.f32 %v593, 1.0
      %v595 = vlog2.pop %v594
      %v596 = vmul.f32 %v595, 0.6931472
      %v597 = vmul.f32 -0.5, %v593
      %v598 = vadd.f32 %v597, 1.0
      %v599 = vmul.f32 %v598, %v593
      %v600 = vand.u32 2147483647, %v593
      %vm601 = vcmp.lt.f32.partialorder %v600, 0.0004427343
      %v602 = vsel %vm601, %v599, %v596
      %v603 = vadd.f32 %v587, %v602
      %v604 = vsel %vm588, %v589, %v603
      %606 = vrot.lane.b32.xlu0 %v604, 125
      %v607 = vpop.permute.xlu0 %606
      %609 = vst.msk [vmem:[%s364] sm:$0xff] %vm585, %v607
      %p610 = scmp.lt.s32.totalorder %s24, 1
      %s611 = scalar_select %p610, %s24, 1
      %p612 = scmp.lt.s32.totalorder %s25, 0
      %s613 = scalar_select %p612, %s25, 0
      %s614 = sadd.s32 %s613, %s611
      %s615 = smul.addr %s614, 8
      %s616 = scalar_lea.vmem %s7, %s615
      %p617 = scmp.lt.s32.totalorder %s24, 1
      %s618 = scalar_select %p617, %s24, 1
      %p619 = scmp.lt.s32.totalorder %s25, 0
      %s620 = scalar_select %p619, %s25, 0
      %s621 = sadd.s32 %s620, %s618
      %s622 = smul.addr %s621, 8
      %s623 = scalar_lea.vmem %s8, %s622
      // Predicated region
      $region49: #{decoder_forward.1} parent=47 // pred_check
        %p624 = pneg %p211
      $region50: #{decoder_forward.1} parent=47 // pred_check_branch
        %626 = sbr.rel (%p624) target = $region52
      $region51: #{decoder_forward.1} parent=47 // pred_region
        _
      $region52: #{decoder_forward.1} parent=47 // pred_fallthru
        _
      // Predicated region
      $region53: #{decoder_forward.1} parent=47 // pred_check
        %p627 = pneg %p239
      $region54: #{decoder_forward.1} parent=47 // pred_check_branch
        %629 = sbr.rel (%p627) target = $region56
      $region55: #{decoder_forward.1} parent=47 // pred_region
        _
      $region56: #{decoder_forward.1} parent=47 // pred_fallthru
        _
    $region48: #{decoder_forward.1} parent=5 // pred_fallthru
      _
    %p630 = scmp.le.s32.totalorder 2, %s15
    // Predicated region
    $region57: #{decoder_forward.1} parent=5 // pred_check
      %p631 = pneg %p630
    $region58: #{decoder_forward.1} parent=5 // pred_check_branch
      %633 = sbr.rel (%p631) target = $region60
    $region59: #{decoder_forward.1} parent=5 // pred_region
      %s634 = ssub.s32 %s15, 2
      // Predicated region
      $region61: #{decoder_forward.1} parent=59 // pred_check
        %p635 = pneg %p217
      $region62: #{decoder_forward.1} parent=59 // pred_check_branch
        %637 = sbr.rel (%p635) target = $region64
      $region63: #{decoder_forward.1} parent=59 // pred_region
        %p638 = scmp.lt.s32.totalorder %s26, 1
        %s639 = scalar_select %p638, %s26, 1
        %p640 = scmp.lt.s32.totalorder %s27, 0
        %s641 = scalar_select %p640, %s27, 0
        %s642 = sadd.s32 %s641, %s639
        %s643 = smul.addr %s642, 8
        %s644 = scalar_lea.vmem %s7, %s643
      $region64: #{decoder_forward.1} parent=59 // pred_fallthru
        _
      // Predicated region
      $region65: #{decoder_forward.1} parent=59 // pred_check
        %p645 = pneg %p245
      $region66: #{decoder_forward.1} parent=59 // pred_check_branch
        %647 = sbr.rel (%p645) target = $region68
      $region67: #{decoder_forward.1} parent=59 // pred_region
        %p648 = scmp.lt.s32.totalorder %s26, 1
        %s649 = scalar_select %p648, %s26, 1
        %p650 = scmp.lt.s32.totalorder %s27, 0
        %s651 = scalar_select %p650, %s27, 0
        %s652 = sadd.s32 %s651, %s649
        %s653 = smul.addr %s652, 8
        %s654 = scalar_lea.vmem %s8, %s653
      $region68: #{decoder_forward.1} parent=59 // pred_fallthru
        _
    $region60: #{decoder_forward.1} parent=5 // pred_fallthru
      _
  $region6: #{decoder_forward.1} parent=0 // loop_footer
    %s19 = sadd.s32 1, %s15
  $region7: #{decoder_forward.1} parent=0 // loop_footer_branch
    %14 = sbr.rel target = $region3
  $region8: #{decoder_forward.1} parent=0 // loop_exit
    _

</llo_original>
